<compile_context>
chip_gen: v5e
topology: v5e:2x2
jax: 0.10.0
libtpu: 0.0.40
codegen_flags: <defaults>
</compile_context>

<pallas_src>
import functools

import jax
import jax.numpy as jnp
from jax.experimental import pallas as pl
from jax.experimental.pallas import tpu as pltpu


def _round_up(x, m):
    return ((x + m - 1) // m) * m


def _pick_tile(full, align, cap):
    """Largest multiple of `align` that divides `full` (itself a multiple of
    `align`) and is <= cap. Always succeeds (worst case returns `align`)."""
    assert full % align == 0 and full >= align
    t = min(cap - cap % align, full)
    while t > align and full % t != 0:
        t -= align
    return max(t, align)


def _use_bf16_tanh_default():
    """bf16 EUP path exists on v6e and newer; v5e and older gain nothing."""
    try:
        kind = jax.devices()[0].device_kind.lower()
    except Exception:
        return False
    return any(tag in kind for tag in ("v6", "v7", "7x"))


def _l_hq2_kernel(x_ref, o_ref, *, bins, half_scale, centers, use_bf16):
    """Grid: (hw-chunk [parallel], NC tile [parallel], HW tile [arbitrary])."""
    h = pl.program_id(2)

    @pl.when(h == 0)
    def _():
        o_ref[...] = jnp.zeros_like(o_ref)

    # One VPU scale pass per tile (cast narrow inputs in-VMEM), shared by all borders.
    z = half_scale * x_ref[...].astype(jnp.float32)             # (tile_nc, tile_hw)

    def border_tanh(c):
        arg = z - c
        if use_bf16:
            # bf16 EUP tanh: 2x elements per push on v6e/v7x.
            arg = arg.astype(jnp.bfloat16)
        return jnp.tanh(arg).astype(jnp.float32)

    # Border reuse with a rolling buffer: bins+1 tanh (EUP) passes per element.
    # Adjacent differences are formed per element (f32) before the HW reduce,
    # so there is no O(HW) cancellation in the accumulated sums.
    prev = border_tanh(centers[0])
    cols = []
    for b in range(bins):
        cur = border_tanh(centers[b + 1])
        cols.append(jnp.sum(prev - cur, axis=1, keepdims=True))  # (tile_nc, 1)
        prev = cur

    # Accumulate directly into the resident output block (f32).
    o_ref[...] += jnp.concatenate(cols, axis=1)                  # (tile_nc, bins)


def l_hq2(x, bins=20, scale_factor=5, eps=1e-5, *, use_bf16_tanh=None,
          tile_nc_cap=256, tile_hw_cap=2048):
    """x: (N, C, H, W) array (NCHW, as in the PyTorch module). Returns scalar."""
    if use_bf16_tanh is None:
        use_bf16_tanh = _use_bf16_tanh_default()

    N, C, H, W = x.shape
    NC, HW = N * C, H * W

    sf = float(scale_factor * bins)
    half_scale = 0.5 * sf
    # Static borders linspace(0, 1, bins+1) with the 0.5*sf factor folded in.
    centers = tuple(half_scale * (j / bins) for j in range(bins + 1))

    x2 = x.reshape(NC, HW)
    if x2.dtype not in (jnp.float32, jnp.bfloat16, jnp.float16):
        x2 = x2.astype(jnp.float32)

    # Pad to (8, 128)-aligned shapes with a value far left of every border:
    # tanh(half_scale*(pad - border)) saturates to exactly -1 (f32 and bf16),
    # so padded elements contribute exactly zero mass to every bin.
    pad_value = -(40.0 / half_scale)
    NC_pad = _round_up(NC, 8)
    HW_pad = _round_up(HW, 128)
    if (NC_pad, HW_pad) != (NC, HW):
        x2 = jnp.pad(x2, ((0, NC_pad - NC), (0, HW_pad - HW)),
                     constant_values=pad_value)

    tile_nc = _pick_tile(NC_pad, 8, tile_nc_cap)
    tile_hw = _pick_tile(HW_pad, 128, tile_hw_cap)      # NOTE: on v5e/v6e a larger cap is a <2% sweep
    num_nc = NC_pad // tile_nc
    num_hw = HW_pad // tile_hw

    # Guarantee >=2 blocks on the parallel axes when possible so v7x's second
    # TensorCore is used even for small NC: split the HW tiles into 2 chunks.
    num_chunks = 2 if (num_nc == 1 and num_hw >= 2 and num_hw % 2 == 0) else 1
    hw_per_chunk = num_hw // num_chunks

    def x_index_map(c, i, h):
        return (i, c * hw_per_chunk + h)

    def out_index_map(c, i, h):
        return (c, i, 0)

    kernel = functools.partial(
        _l_hq2_kernel,
        bins=bins, half_scale=half_scale, centers=centers, use_bf16=use_bf16_tanh)

    in_bytes = int(NC_pad) * int(HW_pad) * jnp.dtype(x2.dtype).itemsize
    cost = pl.CostEstimate(
        flops=int(NC_pad) * int(HW_pad) * (4 * bins + 4),
        transcendentals=int(NC_pad) * int(HW_pad) * (bins + 1),
        bytes_accessed=in_bytes + num_chunks * NC_pad * bins * 4,
    )

    partial_sums = pl.pallas_call(
        kernel,
        out_shape=jax.ShapeDtypeStruct((num_chunks, NC_pad, bins), jnp.float32),
        grid=(num_chunks, num_nc, hw_per_chunk),
        in_specs=[pl.BlockSpec((tile_nc, tile_hw), x_index_map)],
        out_specs=pl.BlockSpec((None, tile_nc, bins), out_index_map),
        compiler_params=pltpu.CompilerParams(
            dimension_semantics=("parallel", "parallel", "arbitrary")),
        cost_estimate=cost,
    )(x2)

    # Tiny XLA epilogue: combine parallel chunks, drop NC padding rows, convert
    # tanh-difference sums to bin probabilities, reduce to the scalar loss.
    s = jnp.sum(partial_sums, axis=0)[:NC]                       # (NC, bins)
    p = (0.5 / HW) * s
    return jnp.sum(p * jnp.log(p + eps))


def _l_hq2_reference(x, bins=20, scale_factor=5, eps=1e-5):
    """Pure-JAX replica of the PyTorch forward, for verification."""
    x = x.astype(jnp.float32)
    borders = jnp.linspace(0.0, 1.0, bins + 1, dtype=jnp.float32)
    left = borders[:-1].reshape(bins, 1, 1, 1, 1)
    right = borders[1:].reshape(bins, 1, 1, 1, 1)
    sf = scale_factor * bins
    xb = jnp.broadcast_to(x[None], (bins,) + x.shape)
    x_bins = jax.nn.sigmoid(sf * (xb - left)) - jax.nn.sigmoid(sf * (xb - right))
    x_bins = jnp.transpose(x_bins, (1, 0, 2, 3, 4))     # (N, bins, C, H, W)
    x_bins = jnp.mean(x_bins, axis=(3, 4))              # (N, bins, C)
    entropy = -jnp.log(x_bins + eps) * x_bins
    return -jnp.sum(entropy)


if __name__ == "__main__":
    key = jax.random.PRNGKey(0)
    k1, k2 = jax.random.split(key)

    # Small NCHW input consistent with the module (image-valued in [0, 1]).
    x = jax.random.uniform(k1, (2, 4, 16, 16), dtype=jnp.float32)
    ref = jax.block_until_ready(_l_hq2_reference(x))

    # f32 tanh path (all generations) -- tight tolerance.
    out_f32 = jax.block_until_ready(l_hq2(x, use_bf16_tanh=False))
    assert jnp.allclose(out_f32, ref, rtol=1e-4, atol=1e-4), (out_f32, ref)

    # Default path (bf16 tanh auto-enabled on v6e/v7x) -- bf16-appropriate tolerance.
    out_def = jax.block_until_ready(l_hq2(x))
    assert jnp.allclose(out_def, ref, rtol=1e-2, atol=1e-2), (out_def, ref)

    # Non-(8,128)-divisible shape exercises the padding/hardened-tiling path.
    x_odd = jax.random.uniform(k2, (2, 3, 15, 17), dtype=jnp.float32)
    ref_odd = jax.block_until_ready(_l_hq2_reference(x_odd))
    out_odd = jax.block_until_ready(l_hq2(x_odd, use_bf16_tanh=False))
    assert jnp.allclose(out_odd, ref_odd, rtol=1e-4, atol=1e-4), (out_odd, ref_odd)

    print("KERNEL_OK")
</pallas_src>

<mosaic_0001>
module attributes {stable_mosaic.version = 11 : i64} {
  func.func @_l_hq2_kernel(%arg0: i32, %arg1: i32, %arg2: i32, %arg3: memref<8x256xf32, #tpu.memory_space<vmem>>, %arg4: memref<1x8x20xf32, #tpu.memory_space<vmem>>) attributes {dimension_semantics = [#tpu.dimension_semantics<parallel>, #tpu.dimension_semantics<parallel>, #tpu.dimension_semantics<arbitrary>], iteration_bounds = array<i64: 1, 1, 1>, scalar_prefetch = 0 : i64, scratch_operands = 0 : i64, tpu.core_type = #tpu.core_type<tc>, window_params = [{transform_indices = @transform_0, window_bounds = array<i64: 8, 256>}, {transform_indices = @transform_1, window_bounds = array<i64: 1, 8, 20>}]} {
    %c0_i32 = arith.constant 0 : i32
    %0 = arith.cmpi eq, %arg2, %c0_i32 : i32
    %1 = arith.extui %0 : i1 to i32
    %c0_i32_0 = arith.constant 0 : i32
    %2 = arith.cmpi ne, %1, %c0_i32_0 : i32
    scf.if %2 {
      %cst_49 = arith.constant 0.000000e+00 : f32
      %138 = vector.broadcast %cst_49 : f32 to vector<8x20xf32>
      %c0_50 = arith.constant 0 : index
      %c0_51 = arith.constant 0 : index
      %c0_52 = arith.constant 0 : index
      %139 = vector.load %arg4[%c0_50, %c0_51, %c0_52] : memref<1x8x20xf32, #tpu.memory_space<vmem>>, vector<1x8x20xf32>
      %140 = vector.shape_cast %139 : vector<1x8x20xf32> to vector<8x20xf32>
      %141 = vector.shape_cast %138 : vector<8x20xf32> to vector<1x8x20xf32>
      tpu.vector_store %arg4[%c0_50, %c0_51, %c0_52], %141 {strides = array<i32>} : memref<1x8x20xf32, #tpu.memory_space<vmem>>, vector<1x8x20xf32>,
    } else {
    }
    %c0 = arith.constant 0 : index
    %c0_1 = arith.constant 0 : index
    %3 = vector.load %arg3[%c0, %c0_1] : memref<8x256xf32, #tpu.memory_space<vmem>>, vector<8x256xf32>
    %cst = arith.constant 5.000000e+01 : f32
    %4 = vector.broadcast %cst : f32 to vector<8x256xf32>
    %5 = arith.mulf %4, %3 : vector<8x256xf32>
    %cst_2 = arith.constant 0.000000e+00 : f32
    %6 = vector.broadcast %cst_2 : f32 to vector<8x256xf32>
    %7 = arith.subf %5, %6 : vector<8x256xf32>
    %8 = math.tanh %7 : vector<8x256xf32>
    %cst_3 = arith.constant 2.500000e+00 : f32
    %9 = vector.broadcast %cst_3 : f32 to vector<8x256xf32>
    %10 = arith.subf %5, %9 : vector<8x256xf32>
    %11 = math.tanh %10 : vector<8x256xf32>
    %12 = arith.subf %8, %11 : vector<8x256xf32>
    %cst_4 = arith.constant dense<0.000000e+00> : vector<8xf32>
    %13 = vector.multi_reduction <add>, %12, %cst_4 [1] : vector<8x256xf32> to vector<8xf32>
    %14 = vector.shape_cast %13 : vector<8xf32> to vector<8x1xf32>
    %cst_5 = arith.constant 5.000000e+00 : f32
    %15 = vector.broadcast %cst_5 : f32 to vector<8x256xf32>
    %16 = arith.subf %5, %15 : vector<8x256xf32>
    %17 = math.tanh %16 : vector<8x256xf32>
    %18 = arith.subf %11, %17 : vector<8x256xf32>
    %cst_6 = arith.constant dense<0.000000e+00> : vector<8xf32>
    %19 = vector.multi_reduction <add>, %18, %cst_6 [1] : vector<8x256xf32> to vector<8xf32>
    %20 = vector.shape_cast %19 : vector<8xf32> to vector<8x1xf32>
    %cst_7 = arith.constant 7.500000e+00 : f32
    %21 = vector.broadcast %cst_7 : f32 to vector<8x256xf32>
    %22 = arith.subf %5, %21 : vector<8x256xf32>
    %23 = math.tanh %22 : vector<8x256xf32>
    %24 = arith.subf %17, %23 : vector<8x256xf32>
    %cst_8 = arith.constant dense<0.000000e+00> : vector<8xf32>
    %25 = vector.multi_reduction <add>, %24, %cst_8 [1] : vector<8x256xf32> to vector<8xf32>
    %26 = vector.shape_cast %25 : vector<8xf32> to vector<8x1xf32>
    %cst_9 = arith.constant 1.000000e+01 : f32
    %27 = vector.broadcast %cst_9 : f32 to vector<8x256xf32>
    %28 = arith.subf %5, %27 : vector<8x256xf32>
    %29 = math.tanh %28 : vector<8x256xf32>
    %30 = arith.subf %23, %29 : vector<8x256xf32>
    %cst_10 = arith.constant dense<0.000000e+00> : vector<8xf32>
    %31 = vector.multi_reduction <add>, %30, %cst_10 [1] : vector<8x256xf32> to vector<8xf32>
    %32 = vector.shape_cast %31 : vector<8xf32> to vector<8x1xf32>
    %cst_11 = arith.constant 1.250000e+01 : f32
    %33 = vector.broadcast %cst_11 : f32 to vector<8x256xf32>
    %34 = arith.subf %5, %33 : vector<8x256xf32>
    %35 = math.tanh %34 : vector<8x256xf32>
    %36 = arith.subf %29, %35 : vector<8x256xf32>
    %cst_12 = arith.constant dense<0.000000e+00> : vector<8xf32>
    %37 = vector.multi_reduction <add>, %36, %cst_12 [1] : vector<8x256xf32> to vector<8xf32>
    %38 = vector.shape_cast %37 : vector<8xf32> to vector<8x1xf32>
    %cst_13 = arith.constant 1.500000e+01 : f32
    %39 = vector.broadcast %cst_13 : f32 to vector<8x256xf32>
    %40 = arith.subf %5, %39 : vector<8x256xf32>
    %41 = math.tanh %40 : vector<8x256xf32>
    %42 = arith.subf %35, %41 : vector<8x256xf32>
    %cst_14 = arith.constant dense<0.000000e+00> : vector<8xf32>
    %43 = vector.multi_reduction <add>, %42, %cst_14 [1] : vector<8x256xf32> to vector<8xf32>
    %44 = vector.shape_cast %43 : vector<8xf32> to vector<8x1xf32>
    %cst_15 = arith.constant 1.750000e+01 : f32
    %45 = vector.broadcast %cst_15 : f32 to vector<8x256xf32>
    %46 = arith.subf %5, %45 : vector<8x256xf32>
    %47 = math.tanh %46 : vector<8x256xf32>
    %48 = arith.subf %41, %47 : vector<8x256xf32>
    %cst_16 = arith.constant dense<0.000000e+00> : vector<8xf32>
    %49 = vector.multi_reduction <add>, %48, %cst_16 [1] : vector<8x256xf32> to vector<8xf32>
    %50 = vector.shape_cast %49 : vector<8xf32> to vector<8x1xf32>
    %cst_17 = arith.constant 2.000000e+01 : f32
    %51 = vector.broadcast %cst_17 : f32 to vector<8x256xf32>
    %52 = arith.subf %5, %51 : vector<8x256xf32>
    %53 = math.tanh %52 : vector<8x256xf32>
    %54 = arith.subf %47, %53 : vector<8x256xf32>
    %cst_18 = arith.constant dense<0.000000e+00> : vector<8xf32>
    %55 = vector.multi_reduction <add>, %54, %cst_18 [1] : vector<8x256xf32> to vector<8xf32>
    %56 = vector.shape_cast %55 : vector<8xf32> to vector<8x1xf32>
    %cst_19 = arith.constant 2.250000e+01 : f32
    %57 = vector.broadcast %cst_19 : f32 to vector<8x256xf32>
    %58 = arith.subf %5, %57 : vector<8x256xf32>
    %59 = math.tanh %58 : vector<8x256xf32>
    %60 = arith.subf %53, %59 : vector<8x256xf32>
    %cst_20 = arith.constant dense<0.000000e+00> : vector<8xf32>
    %61 = vector.multi_reduction <add>, %60, %cst_20 [1] : vector<8x256xf32> to vector<8xf32>
    %62 = vector.shape_cast %61 : vector<8xf32> to vector<8x1xf32>
    %cst_21 = arith.constant 2.500000e+01 : f32
    %63 = vector.broadcast %cst_21 : f32 to vector<8x256xf32>
    %64 = arith.subf %5, %63 : vector<8x256xf32>
    %65 = math.tanh %64 : vector<8x256xf32>
    %66 = arith.subf %59, %65 : vector<8x256xf32>
    %cst_22 = arith.constant dense<0.000000e+00> : vector<8xf32>
    %67 = vector.multi_reduction <add>, %66, %cst_22 [1] : vector<8x256xf32> to vector<8xf32>
    %68 = vector.shape_cast %67 : vector<8xf32> to vector<8x1xf32>
    %cst_23 = arith.constant 2.750000e+01 : f32
    %69 = vector.broadcast %cst_23 : f32 to vector<8x256xf32>
    %70 = arith.subf %5, %69 : vector<8x256xf32>
    %71 = math.tanh %70 : vector<8x256xf32>
    %72 = arith.subf %65, %71 : vector<8x256xf32>
    %cst_24 = arith.constant dense<0.000000e+00> : vector<8xf32>
    %73 = vector.multi_reduction <add>, %72, %cst_24 [1] : vector<8x256xf32> to vector<8xf32>
    %74 = vector.shape_cast %73 : vector<8xf32> to vector<8x1xf32>
    %cst_25 = arith.constant 3.000000e+01 : f32
    %75 = vector.broadcast %cst_25 : f32 to vector<8x256xf32>
    %76 = arith.subf %5, %75 : vector<8x256xf32>
    %77 = math.tanh %76 : vector<8x256xf32>
    %78 = arith.subf %71, %77 : vector<8x256xf32>
    %cst_26 = arith.constant dense<0.000000e+00> : vector<8xf32>
    %79 = vector.multi_reduction <add>, %78, %cst_26 [1] : vector<8x256xf32> to vector<8xf32>
    %80 = vector.shape_cast %79 : vector<8xf32> to vector<8x1xf32>
    %cst_27 = arith.constant 3.250000e+01 : f32
    %81 = vector.broadcast %cst_27 : f32 to vector<8x256xf32>
    %82 = arith.subf %5, %81 : vector<8x256xf32>
    %83 = math.tanh %82 : vector<8x256xf32>
    %84 = arith.subf %77, %83 : vector<8x256xf32>
    %cst_28 = arith.constant dense<0.000000e+00> : vector<8xf32>
    %85 = vector.multi_reduction <add>, %84, %cst_28 [1] : vector<8x256xf32> to vector<8xf32>
    %86 = vector.shape_cast %85 : vector<8xf32> to vector<8x1xf32>
    %cst_29 = arith.constant 3.500000e+01 : f32
    %87 = vector.broadcast %cst_29 : f32 to vector<8x256xf32>
    %88 = arith.subf %5, %87 : vector<8x256xf32>
    %89 = math.tanh %88 : vector<8x256xf32>
    %90 = arith.subf %83, %89 : vector<8x256xf32>
    %cst_30 = arith.constant dense<0.000000e+00> : vector<8xf32>
    %91 = vector.multi_reduction <add>, %90, %cst_30 [1] : vector<8x256xf32> to vector<8xf32>
    %92 = vector.shape_cast %91 : vector<8xf32> to vector<8x1xf32>
    %cst_31 = arith.constant 3.750000e+01 : f32
    %93 = vector.broadcast %cst_31 : f32 to vector<8x256xf32>
    %94 = arith.subf %5, %93 : vector<8x256xf32>
    %95 = math.tanh %94 : vector<8x256xf32>
    %96 = arith.subf %89, %95 : vector<8x256xf32>
    %cst_32 = arith.constant dense<0.000000e+00> : vector<8xf32>
    %97 = vector.multi_reduction <add>, %96, %cst_32 [1] : vector<8x256xf32> to vector<8xf32>
    %98 = vector.shape_cast %97 : vector<8xf32> to vector<8x1xf32>
    %cst_33 = arith.constant 4.000000e+01 : f32
    %99 = vector.broadcast %cst_33 : f32 to vector<8x256xf32>
    %100 = arith.subf %5, %99 : vector<8x256xf32>
    %101 = math.tanh %100 : vector<8x256xf32>
    %102 = arith.subf %95, %101 : vector<8x256xf32>
    %cst_34 = arith.constant dense<0.000000e+00> : vector<8xf32>
    %103 = vector.multi_reduction <add>, %102, %cst_34 [1] : vector<8x256xf32> to vector<8xf32>
    %104 = vector.shape_cast %103 : vector<8xf32> to vector<8x1xf32>
    %cst_35 = arith.constant 4.250000e+01 : f32
    %105 = vector.broadcast %cst_35 : f32 to vector<8x256xf32>
    %106 = arith.subf %5, %105 : vector<8x256xf32>
    %107 = math.tanh %106 : vector<8x256xf32>
    %108 = arith.subf %101, %107 : vector<8x256xf32>
    %cst_36 = arith.constant dense<0.000000e+00> : vector<8xf32>
    %109 = vector.multi_reduction <add>, %108, %cst_36 [1] : vector<8x256xf32> to vector<8xf32>
    %110 = vector.shape_cast %109 : vector<8xf32> to vector<8x1xf32>
    %cst_37 = arith.constant 4.500000e+01 : f32
    %111 = vector.broadcast %cst_37 : f32 to vector<8x256xf32>
    %112 = arith.subf %5, %111 : vector<8x256xf32>
    %113 = math.tanh %112 : vector<8x256xf32>
    %114 = arith.subf %107, %113 : vector<8x256xf32>
    %cst_38 = arith.constant dense<0.000000e+00> : vector<8xf32>
    %115 = vector.multi_reduction <add>, %114, %cst_38 [1] : vector<8x256xf32> to vector<8xf32>
    %116 = vector.shape_cast %115 : vector<8xf32> to vector<8x1xf32>
    %cst_39 = arith.constant 4.750000e+01 : f32
    %117 = vector.broadcast %cst_39 : f32 to vector<8x256xf32>
    %118 = arith.subf %5, %117 : vector<8x256xf32>
    %119 = math.tanh %118 : vector<8x256xf32>
    %120 = arith.subf %113, %119 : vector<8x256xf32>
    %cst_40 = arith.constant dense<0.000000e+00> : vector<8xf32>
    %121 = vector.multi_reduction <add>, %120, %cst_40 [1] : vector<8x256xf32> to vector<8xf32>
    %122 = vector.shape_cast %121 : vector<8xf32> to vector<8x1xf32>
    %cst_41 = arith.constant 5.000000e+01 : f32
    %123 = vector.broadcast %cst_41 : f32 to vector<8x256xf32>
    %124 = arith.subf %5, %123 : vector<8x256xf32>
    %125 = math.tanh %124 : vector<8x256xf32>
    %126 = arith.subf %119, %125 : vector<8x256xf32>
    %cst_42 = arith.constant dense<0.000000e+00> : vector<8xf32>
    %127 = vector.multi_reduction <add>, %126, %cst_42 [1] : vector<8x256xf32> to vector<8xf32>
    %128 = vector.shape_cast %127 : vector<8xf32> to vector<8x1xf32>
    %c0_43 = arith.constant 0 : index
    %c0_44 = arith.constant 0 : index
    %c0_45 = arith.constant 0 : index
    %129 = vector.load %arg4[%c0_43, %c0_44, %c0_45] : memref<1x8x20xf32, #tpu.memory_space<vmem>>, vector<1x8x20xf32>
    %130 = vector.shape_cast %129 : vector<1x8x20xf32> to vector<8x20xf32>
    %131 = tpu.concatenate %14, %20, %26, %32, %38, %44, %50, %56, %62, %68, %74, %80, %86, %92, %98, %104 in 1 : vector<8x1xf32>, vector<8x1xf32>, vector<8x1xf32>, vector<8x1xf32>, vector<8x1xf32>, vector<8x1xf32>, vector<8x1xf32>, vector<8x1xf32>, vector<8x1xf32>, vector<8x1xf32>, vector<8x1xf32>, vector<8x1xf32>, vector<8x1xf32>, vector<8x1xf32>, vector<8x1xf32>, vector<8x1xf32> -> vector<8x16xf32>
    %132 = tpu.concatenate %110, %116, %122, %128 in 1 : vector<8x1xf32>, vector<8x1xf32>, vector<8x1xf32>, vector<8x1xf32> -> vector<8x4xf32>
    %133 = tpu.concatenate %131, %132 in 1 : vector<8x16xf32>, vector<8x4xf32> -> vector<8x20xf32>
    %134 = arith.addf %130, %133 : vector<8x20xf32>
    %c0_46 = arith.constant 0 : index
    %c0_47 = arith.constant 0 : index
    %c0_48 = arith.constant 0 : index
    %135 = vector.load %arg4[%c0_46, %c0_47, %c0_48] : memref<1x8x20xf32, #tpu.memory_space<vmem>>, vector<1x8x20xf32>
    %136 = vector.shape_cast %135 : vector<1x8x20xf32> to vector<8x20xf32>
    %137 = vector.shape_cast %134 : vector<8x20xf32> to vector<1x8x20xf32>
    tpu.vector_store %arg4[%c0_46, %c0_47, %c0_48], %137 {strides = array<i32>} : memref<1x8x20xf32, #tpu.memory_space<vmem>>, vector<1x8x20xf32>,
    return
  }
  func.func @transform_0(%arg0: i32, %arg1: i32, %arg2: i32) -> (i32, i32) {
    %c1_i32 = arith.constant 1 : i32
    %0 = arith.muli %arg0, %c1_i32 : i32
    %1 = arith.addi %0, %arg2 : i32
    %c0_i32 = arith.constant 0 : i32
    return %arg1, %1 : i32, i32
  }
  func.func @transform_1(%arg0: i32, %arg1: i32, %arg2: i32) -> (i32, i32, i32) {
    %c0_i32 = arith.constant 0 : i32
    %c0_i32_0 = arith.constant 0 : i32
    return %arg0, %arg1, %c0_i32 : i32, i32, i32
  }
}

</mosaic_0001>

<llo_original>
// kernel: tpu_custom_call.1
$region0: #{tpu_custom_call.1}
  #allocation0 [shape = 'u32[]', space=smem, size = 0x4, offset = 0x4, fixed_abs, tag = 'smem constant byte address 0x4 - core index']
  #allocation1 [shape = 'u32[72,128]{1,0:T(1,128)}', space=vmem, size = 0x9000, scoped, tag = 'internal scratch']
  %s0 = inlined_call_operand.hbm [shape: f32[8,256], index: 0, kind: input, shape index: {}]
  %s1 = inlined_call_operand.hbm [shape: f32[1,8,20], index: 1, kind: output, shape index: {}]
  %s2 = sld [smem:[#allocation0]]
  $region22: #{tpu_custom_call.1} parent=0
    _
  %s4 = ssub.s32 1, %s2
  %s5 = scalar_select 0, %s4, %s2
  $region1: #{tpu_custom_call.1} parent=0
    #allocation2 [shape = 'u8[8192]{0}', space=vmem, size = 0x2000, scoped, tag = 'input window, operand 0, single buffered']
    #allocation3 [shape = 's32[1]{0}', space=sflag, size = 0x4, scoped, tag = 'scoped memory for tpu_custom_call.1']
    #allocation4 [shape = 's32[1]{0}', space=sflag, size = 0x4, scoped, tag = 'scoped memory for tpu_custom_call.1']
    #allocation5 [shape = 'u8[4096]{0}', space=vmem, size = 0x1000, scoped, tag = 'output window, operand 0, single buffered']
    %6 = vsyncpa [#allocation3], 0
    %7 = vsyncpa [#allocation4], 0
    // Predicated region
    $region2: #{tpu_custom_call.1} parent=1 // pred_check
      _
    $region3: #{tpu_custom_call.1} parent=1 // pred_check_branch
      %9 = sbr.rel (0) target = $region5
    $region4: #{tpu_custom_call.1} parent=1 // pred_region
      %s10 = sadd.s32 0, 0
      %s11 = smul.u32 2, %s10
      %13 = vsyncadd [#allocation3], 0
      %s14 = smul.addr %s11, 8
      %s15 = scalar_lea.hbm %s0, %s14
      %s17 = sshll.u32 %s15, 4
      %s18 = int_to_ptr.hbm [resolvable:$true] %s17
      %s19 = sshll.u32 [#allocation2], 4
      %s20 = int_to_ptr.vmem [resolvable:$true] %s19
      %22 = dma.hbm_to_vmem [thread:$0]  %s18, 256, %s20, [#allocation3]
    $region5: #{tpu_custom_call.1} parent=1 // pred_fallthru
      _
    // Predicated region
    $region6: #{tpu_custom_call.1} parent=1 // pred_check
      _
    $region7: #{tpu_custom_call.1} parent=1 // pred_check_branch
      %24 = sbr.rel (0) target = $region9
    $region8: #{tpu_custom_call.1} parent=1 // pred_region
      %26 = dma.done [#allocation3], 256
    $region9: #{tpu_custom_call.1} parent=1 // pred_fallthru
      _
    %s27 = sadd.s32 0, 0
    %s28 = smul.u32 2, %s27
    %p29 = scmp.eq.s32.totalorder 0, 0
    // Predicated region
    $region10: #{tpu_custom_call.1} parent=1 // pred_check
      %p30 = pneg %p29
    $region11: #{tpu_custom_call.1} parent=1 // pred_check_branch
      %32 = sbr.rel (%p30) target = $region13
    $region12: #{tpu_custom_call.1} parent=1 // pred_region
      %vm33 = vcmask 162816
      %34 = vst.msk [vmem:[#allocation5] sm:$0xff] %vm33, 0.0
    $region13: #{tpu_custom_call.1} parent=1 // pred_fallthru
      _
    %v35 = vld [vmem:[#allocation2] sm:$0xff]
    %v36 = vld [vmem:[#allocation2 + $0x8] sm:$0xff]
    %v37 = vmul.f32 %v35, 50.0
    %v38 = vmul.f32 %v36, 50.0
    %v39 = vtanh.pop %v37
    %v40 = vtanh.pop %v38
    %v41 = vsub.f32 %v37, 2.5
    %v42 = vsub.f32 %v38, 2.5
    %v43 = vtanh.pop %v41
    %v44 = vtanh.pop %v42
    %v45 = vsub.f32 %v39, %v43
    %v46 = vsub.f32 %v40, %v44
    %v47 = vadd.f32 %v45, %v46
    %48 = vadd.xlane.f32.xlu0 %v47
    %v49 = vpop.xlane.xlu0 %48
    %v50 = vsub.f32 %v37, 5.0
    %v51 = vsub.f32 %v38, 5.0
    %v52 = vtanh.pop %v50
    %v53 = vtanh.pop %v51
    %v54 = vsub.f32 %v43, %v52
    %v55 = vsub.f32 %v44, %v53
    %v56 = vadd.f32 %v54, %v55
    %57 = vadd.xlane.f32.xlu0 %v56
    %v58 = vpop.xlane.xlu0 %57
    %v59 = vsub.f32 %v37, 7.5
    %v60 = vsub.f32 %v38, 7.5
    %v61 = vtanh.pop %v59
    %v62 = vtanh.pop %v60
    %v63 = vsub.f32 %v52, %v61
    %v64 = vsub.f32 %v53, %v62
    %v65 = vadd.f32 %v63, %v64
    %66 = vadd.xlane.f32.xlu0 %v65
    %v67 = vpop.xlane.xlu0 %66
    %v68 = vsub.f32 %v37, 10.0
    %v69 = vsub.f32 %v38, 10.0
    %v70 = vtanh.pop %v68
    %v71 = vtanh.pop %v69
    %v72 = vsub.f32 %v61, %v70
    %v73 = vsub.f32 %v62, %v71
    %v74 = vadd.f32 %v72, %v73
    %75 = vadd.xlane.f32.xlu0 %v74
    %v76 = vpop.xlane.xlu0 %75
    %v77 = vsub.f32 %v37, 12.5
    %v78 = vsub.f32 %v38, 12.5
    %v79 = vtanh.pop %v77
    %v80 = vtanh.pop %v78
    %v81 = vsub.f32 %v70, %v79
    %v82 = vsub.f32 %v71, %v80
    %v83 = vadd.f32 %v81, %v82
    %84 = vadd.xlane.f32.xlu0 %v83
    %v85 = vpop.xlane.xlu0 %84
    %v86 = vsub.f32 %v37, 15.0
    %v87 = vsub.f32 %v38, 15.0
    %v88 = vtanh.pop %v86
    %v89 = vtanh.pop %v87
    %v90 = vsub.f32 %v79, %v88
    %v91 = vsub.f32 %v80, %v89
    %v92 = vadd.f32 %v90, %v91
    %93 = vadd.xlane.f32.xlu0 %v92
    %v94 = vpop.xlane.xlu0 %93
    %v95 = vsub.f32 %v37, 17.5
    %v96 = vsub.f32 %v38, 17.5
    %v97 = vtanh.pop %v95
    %v98 = vtanh.pop %v96
    %v99 = vsub.f32 %v88, %v97
    %v100 = vsub.f32 %v89, %v98
    %v101 = vadd.f32 %v99, %v100
    %102 = vadd.xlane.f32.xlu0 %v101
    %v103 = vpop.xlane.xlu0 %102
    %v104 = vsub.f32 %v37, 20.0
    %v105 = vsub.f32 %v38, 20.0
    %v106 = vtanh.pop %v104
    %v107 = vtanh.pop %v105
    %v108 = vsub.f32 %v97, %v106
    %v109 = vsub.f32 %v98, %v107
    %v110 = vadd.f32 %v108, %v109
    %111 = vadd.xlane.f32.xlu0 %v110
    %v112 = vpop.xlane.xlu0 %111
    %v113 = vsub.f32 %v37, 22.5
    %v114 = vsub.f32 %v38, 22.5
    %v115 = vtanh.pop %v113
    %v116 = vtanh.pop %v114
    %v117 = vsub.f32 %v106, %v115
    %v118 = vsub.f32 %v107, %v116
    %v119 = vadd.f32 %v117, %v118
    %120 = vadd.xlane.f32.xlu0 %v119
    %v121 = vpop.xlane.xlu0 %120
    %v122 = vsub.f32 %v37, 25.0
    %v123 = vsub.f32 %v38, 25.0
    %v124 = vtanh.pop %v122
    %v125 = vtanh.pop %v123
    %v126 = vsub.f32 %v115, %v124
    %v127 = vsub.f32 %v116, %v125
    %v128 = vadd.f32 %v126, %v127
    %129 = vadd.xlane.f32.xlu0 %v128
    %v130 = vpop.xlane.xlu0 %129
    %v131 = vsub.f32 %v37, 27.5
    %v132 = vsub.f32 %v38, 27.5
    %v133 = vtanh.pop %v131
    %v134 = vtanh.pop %v132
    %v135 = vsub.f32 %v124, %v133
    %v136 = vsub.f32 %v125, %v134
    %v137 = vadd.f32 %v135, %v136
    %138 = vadd.xlane.f32.xlu0 %v137
    %v139 = vpop.xlane.xlu0 %138
    %v140 = vsub.f32 %v37, 30.0
    %v141 = vsub.f32 %v38, 30.0
    %v142 = vtanh.pop %v140
    %v143 = vtanh.pop %v141
    %v144 = vsub.f32 %v133, %v142
    %v145 = vsub.f32 %v134, %v143
    %v146 = vadd.f32 %v144, %v145
    %147 = vadd.xlane.f32.xlu0 %v146
    %v148 = vpop.xlane.xlu0 %147
    %v149 = vsub.f32 %v37, 32.5
    %v150 = vsub.f32 %v38, 32.5
    %v151 = vtanh.pop %v149
    %v152 = vtanh.pop %v150
    %v153 = vsub.f32 %v142, %v151
    %v154 = vsub.f32 %v143, %v152
    %v155 = vadd.f32 %v153, %v154
    %156 = vadd.xlane.f32.xlu0 %v155
    %v157 = vpop.xlane.xlu0 %156
    %v158 = vsub.f32 %v37, 35.0
    %v159 = vsub.f32 %v38, 35.0
    %v160 = vtanh.pop %v158
    %v161 = vtanh.pop %v159
    %v162 = vsub.f32 %v151, %v160
    %v163 = vsub.f32 %v152, %v161
    %v164 = vadd.f32 %v162, %v163
    %165 = vadd.xlane.f32.xlu0 %v164
    %v166 = vpop.xlane.xlu0 %165
    %v167 = vsub.f32 %v37, 37.5
    %v168 = vsub.f32 %v38, 37.5
    %v169 = vtanh.pop %v167
    %v170 = vtanh.pop %v168
    %v171 = vsub.f32 %v160, %v169
    %v172 = vsub.f32 %v161, %v170
    %v173 = vadd.f32 %v171, %v172
    %174 = vadd.xlane.f32.xlu0 %v173
    %v175 = vpop.xlane.xlu0 %174
    %v176 = vsub.f32 %v37, 40.0
    %v177 = vsub.f32 %v38, 40.0
    %v178 = vtanh.pop %v176
    %v179 = vtanh.pop %v177
    %v180 = vsub.f32 %v169, %v178
    %v181 = vsub.f32 %v170, %v179
    %v182 = vadd.f32 %v180, %v181
    %183 = vadd.xlane.f32.xlu0 %v182
    %v184 = vpop.xlane.xlu0 %183
    %v185 = vsub.f32 %v37, 42.5
    %v186 = vsub.f32 %v38, 42.5
    %v187 = vtanh.pop %v185
    %v188 = vtanh.pop %v186
    %v189 = vsub.f32 %v178, %v187
    %v190 = vsub.f32 %v179, %v188
    %v191 = vadd.f32 %v189, %v190
    %192 = vadd.xlane.f32.xlu0 %v191
    %v193 = vpop.xlane.xlu0 %192
    %v194 = vsub.f32 %v37, 45.0
    %v195 = vsub.f32 %v38, 45.0
    %v196 = vtanh.pop %v194
    %v197 = vtanh.pop %v195
    %v198 = vsub.f32 %v187, %v196
    %v199 = vsub.f32 %v188, %v197
    %v200 = vadd.f32 %v198, %v199
    %201 = vadd.xlane.f32.xlu0 %v200
    %v202 = vpop.xlane.xlu0 %201
    %v203 = vsub.f32 %v37, 47.5
    %v204 = vsub.f32 %v38, 47.5
    %v205 = vtanh.pop %v203
    %v206 = vtanh.pop %v204
    %v207 = vsub.f32 %v196, %v205
    %v208 = vsub.f32 %v197, %v206
    %v209 = vadd.f32 %v207, %v208
    %210 = vadd.xlane.f32.xlu0 %v209
    %v211 = vpop.xlane.xlu0 %210
    %v212 = vsub.f32 %v37, 50.0
    %v213 = vsub.f32 %v38, 50.0
    %v214 = vtanh.pop %v212
    %v215 = vtanh.pop %v213
    %v216 = vsub.f32 %v205, %v214
    %v217 = vsub.f32 %v206, %v215
    %v218 = vadd.f32 %v216, %v217
    %219 = vadd.xlane.f32.xlu0 %v218
    %v220 = vpop.xlane.xlu0 %219
    %v221 = vld [vmem:[#allocation5] sm:$0xff]
    %vm222 = vcmask 7168
    %v223 = vsel %vm222, %v49, %v58
    %vm224 = vcmask 15360
    %v225 = vsel %vm224, %v223, %v67
    %vm226 = vcmask 23552
    %v227 = vsel %vm226, %v225, %v76
    %vm228 = vcmask 31744
    %v229 = vsel %vm228, %v227, %v85
    %vm230 = vcmask 39936
    %v231 = vsel %vm230, %v229, %v94
    %vm232 = vcmask 48128
    %v233 = vsel %vm232, %v231, %v103
    %vm234 = vcmask 56320
    %v235 = vsel %vm234, %v233, %v112
    %vm236 = vcmask 64512
    %v237 = vsel %vm236, %v235, %v121
    %vm238 = vcmask 72704
    %v239 = vsel %vm238, %v237, %v130
    %vm240 = vcmask 80896
    %v241 = vsel %vm240, %v239, %v139
    %vm242 = vcmask 89088
    %v243 = vsel %vm242, %v241, %v148
    %vm244 = vcmask 97280
    %v245 = vsel %vm244, %v243, %v157
    %vm246 = vcmask 105472
    %v247 = vsel %vm246, %v245, %v166
    %vm248 = vcmask 113664
    %v249 = vsel %vm248, %v247, %v175
    %vm250 = vcmask 121856
    %v251 = vsel %vm250, %v249, %v184
    %v252 = vsel %vm222, %v193, %v202
    %v253 = vsel %vm224, %v252, %v211
    %v254 = vsel %vm226, %v253, %v220
    %256 = vrot.lane.b32.xlu0 %v254, 16
    %v257 = vpop.permute.xlu0 %256
    %vm259 = vcmask 130048
    %v260 = vsel %vm259, %v251, %v257
    %v261 = vadd.f32 %v221, %v260
    %vm262 = vcmask 162816
    %263 = vst.msk [vmem:[#allocation5] sm:$0xff] %vm262, %v261
    // Predicated region
    $region14: #{tpu_custom_call.1} parent=1 // pred_check
      _
    $region15: #{tpu_custom_call.1} parent=1 // pred_check_branch
      %265 = sbr.rel (0) target = $region17
    $region16: #{tpu_custom_call.1} parent=1 // pred_region
      %267 = vsyncadd [#allocation4], 0
      %s269 = sshll.u32 [#allocation5], 4
      %s270 = int_to_ptr.vmem [resolvable:$true] %s269
      %s271 = sshll.u32 %s1, 4
      %s272 = int_to_ptr.hbm [resolvable:$true] %s271
      %274 = dma.vmem_to_hbm [thread:$0]  %s270, 128, %s272, [#allocation4]
    $region17: #{tpu_custom_call.1} parent=1 // pred_fallthru
      _
    // Predicated region
    $region18: #{tpu_custom_call.1} parent=1 // pred_check
      _
    $region19: #{tpu_custom_call.1} parent=1 // pred_check_branch
      %276 = sbr.rel (0) target = $region21
    $region20: #{tpu_custom_call.1} parent=1 // pred_region
      %278 = dma.done [#allocation4], 128
    $region21: #{tpu_custom_call.1} parent=1 // pred_fallthru
      _
    %279 = vsyncpa [#allocation3], 1
    %280 = vsyncpa [#allocation4], 1

</llo_original>
